<compile_context>
chip_gen: v7x
topology: tpu7x:2x2x1
jax: 0.10.0
libtpu: 0.0.40
codegen_flags: <defaults>
</compile_context>

<pallas_src>
import jax
import jax.numpy as jnp
from jax.experimental import pallas as pl
from jax.experimental.pallas import tpu as pltpu

_LANES = 128
_SUBLANES = 8
_MAX_BLOCK_ROWS = 2048      # 2048*128*4 B = 1 MiB per input per pipeline buffer
_X_PAD = -1.0e6             # sentinel: contributes exactly 0 to the loss sum


def _sce_partial_sum_kernel(x_ref, t_ref, o_ref):
    # Grid = (cores, blocks_per_core); axis 1 is the reduction axis.
    i = pl.program_id(1)

    @pl.when(i == 0)
    def _():
        o_ref[...] = jnp.zeros_like(o_ref)

    x = x_ref[...].astype(jnp.float32)
    t = t_ref[...].astype(jnp.float32)

    # Elementwise loss term: -x*target + max(x, 0) + log(1 + exp(-|x|))
    # (kept literally as in the PyTorch module for parity)
    val = -x * t + jnp.maximum(x, 0.0) + jnp.log(1.0 + jnp.exp(-jnp.abs(x)))

    # Fold the block onto an (8, 128) accumulator.  The reshape keeps the last
    # two dims as whole (8, 128) vreg tiles, so the axis-0 sum is pure per-vreg
    # VPU adds (no XLU traffic).  The cross-lane reduction happens once, in
    # the wrapper.
    o_ref[...] += val.reshape(-1, _SUBLANES, _LANES).sum(axis=0)


def sigmoid_cross_entropy_loss(x, target):
    assert x.shape == target.shape
    n = x.size

    xf = jnp.ravel(x)
    tf = jnp.ravel(target)

    # --- choose tiling -----------------------------------------------------
    rows = pl.cdiv(n, _LANES)
    rows = pl.cdiv(rows, _SUBLANES) * _SUBLANES            # sublane multiple
    n_blocks = pl.cdiv(rows, _MAX_BLOCK_ROWS)
    n_cores = 2 if n_blocks >= 2 else 1                    # v7x megacore split
    blocks_per_core = pl.cdiv(n_blocks, n_cores)
    n_blocks = blocks_per_core * n_cores
    block_rows = pl.cdiv(pl.cdiv(rows, n_blocks), _SUBLANES) * _SUBLANES
    padded_rows = n_blocks * block_rows
    padded_n = padded_rows * _LANES

    # --- (tiny) sentinel padding of the ragged tail ------------------------
    # Padded elements contribute exactly 0, so the kernel needs no mask.
    # Skipped entirely when the size already fits (as in the demo shape).
    if padded_n != n:
        xf = jnp.pad(xf, (0, padded_n - n), constant_values=_X_PAD)
        tf = jnp.pad(tf, (0, padded_n - n), constant_values=0)

    x2 = xf.reshape(padded_rows, _LANES)
    t2 = tf.reshape(padded_rows, _LANES)

    in_map = lambda c, i: (c * blocks_per_core + i, 0)

    partial = pl.pallas_call(
        _sce_partial_sum_kernel,
        out_shape=jax.ShapeDtypeStruct((n_cores, _SUBLANES, _LANES), jnp.float32),
        grid_spec=pltpu.PrefetchScalarGridSpec(
            num_scalar_prefetch=0,
            grid=(n_cores, blocks_per_core),
            in_specs=[
                pl.BlockSpec((block_rows, _LANES), in_map),
                pl.BlockSpec((block_rows, _LANES), in_map),
            ],
            out_specs=pl.BlockSpec((None, _SUBLANES, _LANES),
                                   lambda c, i: (c, 0, 0)),
        ),
        compiler_params=pltpu.CompilerParams(
            dimension_semantics=("parallel", "arbitrary")),
    )(x2, t2)

    # Single final reduction + mean + abs (trivial scalar work, done in XLA).
    return jnp.abs(jnp.sum(partial) / n)


def _reference(x, target):
    x = x.astype(jnp.float32)
    t = target.astype(jnp.float32)
    tmp = 1.0 + jnp.exp(-jnp.abs(x))
    return jnp.abs(jnp.mean(-x * t + jnp.maximum(x, 0.0) + jnp.log(tmp)))


if __name__ == "__main__":
    key = jax.random.PRNGKey(0)
    k1, k2 = jax.random.split(key)
    # logits and binary targets, NCHW-like shape
    x = jax.random.normal(k1, (2, 4, 16, 16), dtype=jnp.float32) * 2.0
    target = (jax.random.uniform(k2, (2, 4, 16, 16)) > 0.5).astype(jnp.float32)

    loss = sigmoid_cross_entropy_loss(x, target)
    jax.block_until_ready(loss)

    ref = _reference(x, target)
    assert jnp.allclose(loss, ref, rtol=1e-5, atol=1e-6), (loss, ref)
    print("KERNEL_OK")
</pallas_src>

<mosaic_0001>
module attributes {stable_mosaic.version = 11 : i64} {
  func.func @_sce_partial_sum_kernel(%arg0: i32, %arg1: i32, %arg2: memref<16x128xf32, #tpu.memory_space<vmem>>, %arg3: memref<16x128xf32, #tpu.memory_space<vmem>>, %arg4: memref<1x8x128xf32, #tpu.memory_space<vmem>>) attributes {dimension_semantics = [#tpu.dimension_semantics<parallel>, #tpu.dimension_semantics<arbitrary>], iteration_bounds = array<i64: 1, 1>, scalar_prefetch = 0 : i64, scratch_operands = 0 : i64, tpu.core_type = #tpu.core_type<tc>, window_params = [{transform_indices = @transform_0, window_bounds = array<i64: 16, 128>}, {transform_indices = @transform_1, window_bounds = array<i64: 16, 128>}, {transform_indices = @transform_2, window_bounds = array<i64: 1, 8, 128>}]} {
    %c0_i32 = arith.constant 0 : i32
    %0 = arith.cmpi eq, %arg1, %c0_i32 : i32
    %1 = arith.extui %0 : i1 to i32
    %c0_i32_0 = arith.constant 0 : i32
    %2 = arith.cmpi ne, %1, %c0_i32_0 : i32
    scf.if %2 {
      %cst_14 = arith.constant 0.000000e+00 : f32
      %27 = vector.broadcast %cst_14 : f32 to vector<8x128xf32>
      %c0_15 = arith.constant 0 : index
      %c0_16 = arith.constant 0 : index
      %c0_17 = arith.constant 0 : index
      %28 = vector.load %arg4[%c0_15, %c0_16, %c0_17] : memref<1x8x128xf32, #tpu.memory_space<vmem>>, vector<1x8x128xf32>
      %29 = vector.shape_cast %28 : vector<1x8x128xf32> to vector<8x128xf32>
      %30 = vector.shape_cast %27 : vector<8x128xf32> to vector<1x8x128xf32>
      tpu.vector_store %arg4[%c0_15, %c0_16, %c0_17], %30 {strides = array<i32>} : memref<1x8x128xf32, #tpu.memory_space<vmem>>, vector<1x8x128xf32>,
    } else {
    }
    %c0 = arith.constant 0 : index
    %c0_1 = arith.constant 0 : index
    %3 = vector.load %arg2[%c0, %c0_1] : memref<16x128xf32, #tpu.memory_space<vmem>>, vector<16x128xf32>
    %c0_2 = arith.constant 0 : index
    %c0_3 = arith.constant 0 : index
    %4 = vector.load %arg3[%c0_2, %c0_3] : memref<16x128xf32, #tpu.memory_space<vmem>>, vector<16x128xf32>
    %cst = arith.constant 0.000000e+00 : f32
    %5 = vector.broadcast %cst : f32 to vector<16x128xf32>
    %6 = arith.subf %5, %3 : vector<16x128xf32>
    %7 = arith.mulf %6, %4 : vector<16x128xf32>
    %cst_4 = arith.constant 0.000000e+00 : f32
    %8 = vector.broadcast %cst_4 : f32 to vector<16x128xf32>
    %9 = arith.maximumf %3, %8 : vector<16x128xf32>
    %10 = arith.addf %7, %9 : vector<16x128xf32>
    %11 = math.absf %3 : vector<16x128xf32>
    %cst_5 = arith.constant 0.000000e+00 : f32
    %12 = vector.broadcast %cst_5 : f32 to vector<16x128xf32>
    %13 = arith.subf %12, %11 : vector<16x128xf32>
    %14 = math.exp %13 : vector<16x128xf32>
    %cst_6 = arith.constant 1.000000e+00 : f32
    %15 = vector.broadcast %cst_6 : f32 to vector<16x128xf32>
    %16 = arith.addf %15, %14 : vector<16x128xf32>
    %17 = math.log %16 : vector<16x128xf32>
    %18 = arith.addf %10, %17 : vector<16x128xf32>
    %c0_7 = arith.constant 0 : index
    %c0_8 = arith.constant 0 : index
    %c0_9 = arith.constant 0 : index
    %19 = vector.load %arg4[%c0_7, %c0_8, %c0_9] : memref<1x8x128xf32, #tpu.memory_space<vmem>>, vector<1x8x128xf32>
    %20 = vector.shape_cast %19 : vector<1x8x128xf32> to vector<8x128xf32>
    %21 = vector.shape_cast %18 : vector<16x128xf32> to vector<2x8x128xf32>
    %cst_10 = arith.constant dense<0.000000e+00> : vector<8x128xf32>
    %22 = vector.multi_reduction <add>, %21, %cst_10 [0] : vector<2x8x128xf32> to vector<8x128xf32>
    %23 = arith.addf %20, %22 : vector<8x128xf32>
    %c0_11 = arith.constant 0 : index
    %c0_12 = arith.constant 0 : index
    %c0_13 = arith.constant 0 : index
    %24 = vector.load %arg4[%c0_11, %c0_12, %c0_13] : memref<1x8x128xf32, #tpu.memory_space<vmem>>, vector<1x8x128xf32>
    %25 = vector.shape_cast %24 : vector<1x8x128xf32> to vector<8x128xf32>
    %26 = vector.shape_cast %23 : vector<8x128xf32> to vector<1x8x128xf32>
    tpu.vector_store %arg4[%c0_11, %c0_12, %c0_13], %26 {strides = array<i32>} : memref<1x8x128xf32, #tpu.memory_space<vmem>>, vector<1x8x128xf32>,
    return
  }
  func.func @transform_0(%arg0: i32, %arg1: i32) -> (i32, i32) {
    %c1_i32 = arith.constant 1 : i32
    %0 = arith.muli %arg0, %c1_i32 : i32
    %1 = arith.addi %0, %arg1 : i32
    %c0_i32 = arith.constant 0 : i32
    %c0_i32_0 = arith.constant 0 : i32
    return %1, %c0_i32 : i32, i32
  }
  func.func @transform_1(%arg0: i32, %arg1: i32) -> (i32, i32) {
    %c1_i32 = arith.constant 1 : i32
    %0 = arith.muli %arg0, %c1_i32 : i32
    %1 = arith.addi %0, %arg1 : i32
    %c0_i32 = arith.constant 0 : i32
    %c0_i32_0 = arith.constant 0 : i32
    return %1, %c0_i32 : i32, i32
  }
  func.func @transform_2(%arg0: i32, %arg1: i32) -> (i32, i32, i32) {
    %c0_i32 = arith.constant 0 : i32
    %c0_i32_0 = arith.constant 0 : i32
    %c0_i32_1 = arith.constant 0 : i32
    return %arg0, %c0_i32, %c0_i32_0 : i32, i32, i32
  }
}

</mosaic_0001>

<llo_original>
// kernel: tpu_custom_call.1
$region0: #{tpu_custom_call.1}
  #allocation0 [shape = 'u32[]', space=smem, size = 0x4, offset = 0x4, fixed_abs, tag = 'smem constant byte address 0x4 - core index']
  #allocation1 [shape = 'u32[144,128]{1,0:T(1,128)}', space=vmem, size = 0x12000, scoped, tag = 'internal scratch']
  %s0 = inlined_call_operand.hbm [shape: f32[16,128], index: 0, kind: input, shape index: {}]
  %s1 = inlined_call_operand.hbm [shape: f32[16,128], index: 1, kind: input, shape index: {}]
  %s2 = inlined_call_operand.hbm [shape: f32[1,8,128], index: 2, kind: output, shape index: {}]
  %s3 = sld [smem:[#allocation0]]
  $region30: #{tpu_custom_call.1} parent=0
    _
  %s5 = ssub.s32 1, %s3
  %s6 = scalar_select 0, %s5, %s3
  $region1: #{tpu_custom_call.1} parent=0
    #allocation2 [shape = 'u8[8192]{0}', space=vmem, size = 0x2000, scoped, tag = 'input window, operand 0, single buffered']
    #allocation3 [shape = 's32[1]{0}', space=sflag, size = 0x4, scoped, tag = 'scoped memory for tpu_custom_call.1']
    #allocation4 [shape = 's32[1]{0}', space=sflag, size = 0x4, scoped, tag = 'scoped memory for tpu_custom_call.1']
    #allocation5 [shape = 'u8[8192]{0}', space=vmem, size = 0x2000, scoped, tag = 'input window, operand 1, single buffered']
    #allocation6 [shape = 's32[1]{0}', space=sflag, size = 0x4, scoped, tag = 'scoped memory for tpu_custom_call.1']
    #allocation7 [shape = 'u8[4096]{0}', space=vmem, size = 0x1000, scoped, tag = 'output window, operand 0, single buffered']
    %7 = vsyncpa [#allocation3], 0
    %8 = vsyncpa [#allocation6], 0
    %9 = vsyncpa [#allocation4], 0
    // Predicated region
    $region2: #{tpu_custom_call.1} parent=1 // pred_check
      _
    $region3: #{tpu_custom_call.1} parent=1 // pred_check_branch
      %11 = sbr.rel (0) target = $region5
    $region4: #{tpu_custom_call.1} parent=1 // pred_region
      %s12 = sadd.s32 0, 0
      %s13 = smul.u32 2, %s12
      %s15 = ssub.s32 256, 256
      %16 = vsyncadd [#allocation3], %s15
      %s17 = smul.addr %s13, 128
      %s18 = scalar_lea.hbm %s0, %s17
      %s19 = sshll.u32 [#allocation2], 4
      %s20 = int_to_ptr.vmem [resolvable:$true] %s19
      %25 = dma.hbm_to_vmem [thread:$0]  %s18, 256, %s20, [#allocation3], 128, 128, 8
    $region5: #{tpu_custom_call.1} parent=1 // pred_fallthru
      _
    // Predicated region
    $region6: #{tpu_custom_call.1} parent=1 // pred_check
      _
    $region7: #{tpu_custom_call.1} parent=1 // pred_check_branch
      %27 = sbr.rel (0) target = $region9
    $region8: #{tpu_custom_call.1} parent=1 // pred_region
      %s28 = sadd.s32 0, 0
      %s29 = smul.u32 2, %s28
      %s31 = ssub.s32 256, 256
      %32 = vsyncadd [#allocation6], %s31
      %s33 = smul.addr %s29, 128
      %s34 = scalar_lea.hbm %s1, %s33
      %s35 = sshll.u32 [#allocation5], 4
      %s36 = int_to_ptr.vmem [resolvable:$true] %s35
      %41 = dma.hbm_to_vmem [thread:$0]  %s34, 256, %s36, [#allocation6], 128, 128, 8
    $region9: #{tpu_custom_call.1} parent=1 // pred_fallthru
      _
    // Predicated region
    $region10: #{tpu_custom_call.1} parent=1 // pred_check
      _
    $region11: #{tpu_custom_call.1} parent=1 // pred_check_branch
      %43 = sbr.rel (0) target = $region13
    $region12: #{tpu_custom_call.1} parent=1 // pred_region
      %44 = dma.done [#allocation3], 256
    $region13: #{tpu_custom_call.1} parent=1 // pred_fallthru
      _
    // Predicated region
    $region14: #{tpu_custom_call.1} parent=1 // pred_check
      _
    $region15: #{tpu_custom_call.1} parent=1 // pred_check_branch
      %46 = sbr.rel (0) target = $region17
    $region16: #{tpu_custom_call.1} parent=1 // pred_region
      %47 = dma.done [#allocation6], 256
    $region17: #{tpu_custom_call.1} parent=1 // pred_fallthru
      _
    %s48 = sadd.s32 0, 0
    %s49 = smul.u32 2, %s48
    %s50 = sadd.s32 0, 0
    %s51 = smul.u32 2, %s50
    %p52 = scmp.eq.s32.totalorder 0, 0
    // Predicated region
    $region18: #{tpu_custom_call.1} parent=1 // pred_check
      %p53 = pneg %p52
    $region19: #{tpu_custom_call.1} parent=1 // pred_check_branch
      %55 = sbr.rel (%p53) target = $region21
    $region20: #{tpu_custom_call.1} parent=1 // pred_region
      %56 = vst [vmem:[#allocation7] sm:$0xff] 0.0
    $region21: #{tpu_custom_call.1} parent=1 // pred_fallthru
      _
    %v57 = vld [vmem:[#allocation2] sm:$0xff]
    %v58 = vld [vmem:[#allocation2 + $0x8] sm:$0xff]
    %v59 = vld [vmem:[#allocation5] sm:$0xff]
    %v60 = vld [vmem:[#allocation5 + $0x8] sm:$0xff]
    %v61 = vsub.f32 0.0, %v57
    %v62 = vsub.f32 0.0, %v58
    %v63 = vmul.f32 %v61, %v59
    %v64 = vmul.f32 %v62, %v60
    %v65 = vmax.f32 %v57, 0.0
    %v66 = vmax.f32 %v58, 0.0
    %v67 = vadd.f32 %v63, %v65
    %v68 = vadd.f32 %v64, %v66
    %v69 = vand.u32 2147483647, %v57
    %v70 = vand.u32 2147483647, %v58
    %v71 = vsub.f32 0.0, %v69
    %v72 = vsub.f32 0.0, %v70
    %v73 = vmul.f32 %v71, 1.442695
    %v74 = vpow.pop %v73
    %v75 = vmul.f32 %v72, 1.442695
    %v76 = vpow.pop %v75
    %v77 = vadd.f32 %v74, 1.0
    %v78 = vadd.f32 %v76, 1.0
    %v79 = vlog2.pop %v77
    %v80 = vmul.f32 %v79, 0.6931472
    %v81 = vlog2.pop %v78
    %v82 = vmul.f32 %v81, 0.6931472
    %v83 = vadd.f32 %v67, %v80
    %v84 = vadd.f32 %v68, %v82
    %v85 = vld [vmem:[#allocation7] sm:$0xff]
    %v86 = vadd.f32 %v83, %v84
    %v87 = vadd.f32 %v85, %v86
    %88 = vst [vmem:[#allocation7] sm:$0xff] %v87
    // Predicated region
    $region22: #{tpu_custom_call.1} parent=1 // pred_check
      _
    $region23: #{tpu_custom_call.1} parent=1 // pred_check_branch
      %90 = sbr.rel (0) target = $region25
    $region24: #{tpu_custom_call.1} parent=1 // pred_region
      %s92 = ssub.s32 128, 128
      %93 = vsyncadd [#allocation4], %s92
      %s95 = sshll.u32 [#allocation7], 4
      %s96 = int_to_ptr.vmem [resolvable:$true] %s95
      %98 = dma.vmem_to_hbm [thread:$0]  %s96, 128, %s2, [#allocation4]
    $region25: #{tpu_custom_call.1} parent=1 // pred_fallthru
      _
    // Predicated region
    $region26: #{tpu_custom_call.1} parent=1 // pred_check
      _
    $region27: #{tpu_custom_call.1} parent=1 // pred_check_branch
      %100 = sbr.rel (0) target = $region29
    $region28: #{tpu_custom_call.1} parent=1 // pred_region
      %101 = dma.done [#allocation4], 128
    $region29: #{tpu_custom_call.1} parent=1 // pred_fallthru
      _
    %102 = vsyncpa [#allocation3], 1
    %103 = vsyncpa [#allocation6], 1
    %104 = vsyncpa [#allocation4], 1

</llo_original>
